<compile_context>
chip_gen: v7x
topology: tpu7x:2x2x1
jax: 0.10.0
libtpu: 0.0.40
codegen_flags: <defaults>
</compile_context>

<pallas_src>
import functools
import math

import jax
import jax.numpy as jnp
from jax import lax
from jax.experimental import pallas as pl
from jax.experimental.pallas import tpu as pltpu


def _gelu(x):
    # tanh approximation used by SAPGraph's PositionwiseFeedForward
    return 0.5 * x * (1.0 + jnp.tanh(math.sqrt(2.0 / math.pi) * (x + 0.044715 * x ** 3)))


def _round_up(x, m):
    return (x + m - 1) // m * m


def _pick_tile_and_vmem(n_dst, n_src, num_heads, out_dim, ffn_dim, dst_tile=None):
    """Generation-aware dst-tile size + honest VMEM budget.

    Accounts for 128-lane padding of every block, default double-buffering of the
    streamed AND resident inputs, and the in-kernel softmax/FFN temporaries.
    Budget is ~0.8*capacity: ~51 MiB on v7x (64 MiB VMEM), ~102 MiB on v5e/v6e.
    """
    try:
        cap = int(pltpu.get_tpu_info().vmem_capacity_bytes)
    except Exception:  # not on TPU / API unavailable: assume v5e/v6e capacity
        cap = 128 * 1024 * 1024
    budget = int(cap * 0.8)  # leave headroom for compiler scratch

    lane = 128
    H = num_heads
    out_l = _round_up(out_dim, lane)
    ffn_l = _round_up(ffn_dim, lane)
    src_l = _round_up(n_src, lane)

    # resident inputs (grid-invariant; still double-buffered by default BlockSpecs,
    # so count them twice — pl.Buffered(1) would free the duplicate but is left at
    # default for portability)
    resident = 2 * H * _round_up(n_src, 8) * out_l * 2                                   # zexp (bf16)
    resident += 2 * (_round_up(out_dim, 8) * ffn_l + _round_up(ffn_dim, 8) * out_l) * 4  # w1, w2
    resident += 2 * 6 * 8 * max(out_l, ffn_l) * 4                                        # gamma/beta/b1/b2 + slack

    # per-dst-row bytes: streamed blocks (x2 buffers) + in-kernel temporaries
    per_row = 2 * H * src_l * 2                    # logits stream (bf16), double-buffered
    per_row += 2 * 2 * out_l * 4                   # origin + out blocks (f32), double-buffered
    per_row += 4 * H * src_l * 4                   # e / p / (e-m) / alpha temporaries (f32)
    per_row += H * src_l * 2                       # alpha cast to bf16 for the MXU
    per_row += 6 * out_l * 4 + ffn_l * 4           # gat/h_elu/hres/xn/ffn temporaries + inter

    if dst_tile is None:
        avail = budget - resident - (4 << 20)
        td = max(8, min(512, (avail // per_row) // 8 * 8)) if avail > 8 * per_row else 8
    else:
        td = max(8, _round_up(int(dst_tile), 8))

    n_dst8 = _round_up(n_dst, 8)
    td = min(td, n_dst8)
    # expose >=2 grid steps when possible so the "parallel" dst axis can shard
    # across the two v7x TensorCores (negligible extra per-step overhead elsewhere).
    if td >= n_dst8 and n_dst8 >= 16:
        td = _round_up((n_dst8 + 1) // 2, 8)

    need = resident + td * per_row + (4 << 20)
    vmem_limit = int(max(32 << 20, min(budget, need)))
    return td, vmem_limit


def wswgat_kernel(logits_ref, origin_ref, zexp_ref,
                  gamma_ref, beta_ref, w1_ref, b1_ref, w2_ref, b2_ref,
                  out_ref, *, num_heads):
    f32 = jnp.float32

    # ---------------- attention softmax over source nodes ----------------
    # logits already hold a_z.z_j + a_f.(W_feat e_ij + b) + (-1e9)*(1-adj),
    # pre-folded in the wrapper; layout [H, Td, Nsrc] keeps Nsrc on the 128-lane
    # axis so every vreg is fully utilised and the reduction is a lane reduction.
    e = logits_ref[...].astype(f32)                       # [H, Td, Nsrc]
    e = jnp.where(e > 0, e, 0.01 * e)                     # F.leaky_relu (slope 0.01)
    m = jnp.max(e, axis=-1, keepdims=True)                # [H, Td, 1]
    p = jnp.exp(e - m)                                    # masked logits underflow to exactly 0
    inv = 1.0 / jnp.sum(p, axis=-1, keepdims=True)        # exact division on tiny [H, Td, 1]
    alpha = (p * inv).astype(zexp_ref.dtype)              # bf16 for the MXU

    # ---------------- attention-weighted sum over sources ----------------
    # H unrolled MXU matmuls against the resident head-expanded (block-diagonal)
    # z — no in-kernel relayout/reshape; accumulate in f32.
    # (For head_dim >= 128, switch zexp to per-head [H,Nsrc,dh] slabs to drop the
    #  H-fold redundant MXU work; irrelevant for out_dim <= 256.)
    gat = jnp.dot(alpha[0], zexp_ref[0], preferred_element_type=f32)       # [Td, out_dim]
    for h in range(1, num_heads):
        gat = gat + jnp.dot(alpha[h], zexp_ref[h], preferred_element_type=f32)

    # ---------------- elu + residual with origin ----------------
    h_elu = jnp.where(gat > 0, gat, jnp.exp(gat) - 1.0)                    # F.elu (alpha=1.0)
    hres = h_elu + origin_ref[...].astype(f32)

    # ---------------- PositionwiseFeedForward (eval: dropouts identity) ----------------
    mu = jnp.mean(hres, axis=-1, keepdims=True)
    var = jnp.mean(jnp.square(hres - mu), axis=-1, keepdims=True)
    xn = (hres - mu) * lax.rsqrt(var + 1e-6)                               # LayerNorm eps=1e-6
    xn = xn * gamma_ref[...] + beta_ref[...]
    inter = _gelu(jnp.dot(xn, w1_ref[...], preferred_element_type=f32) + b1_ref[...])
    ffn = jnp.dot(inter, w2_ref[...], preferred_element_type=f32) + b2_ref[...]

    # NOTE: out_dim < 128 means a masked partial store; minor vs. the logits
    # stream, so the lane-dense output-reshape trick is not applied here.
    out_ref[...] = (ffn + hres).astype(out_ref.dtype)


def wswgat_forward(neighbor, origin, efeat, adj, params, num_heads, *, dst_tile=None):
    """neighbor: [Nsrc, Din], origin: [Ndst, Dout], efeat: [Ndst, Nsrc, F], adj: [Ndst, Nsrc]."""
    n_dst, out_dim = origin.shape
    n_src, in_dim = neighbor.shape
    feat_dim = efeat.shape[-1]
    assert out_dim % num_heads == 0
    head_dim = out_dim // num_heads
    H = num_heads
    f32 = jnp.float32
    ffn_dim = params["w1"].shape[-1]
    # implicit layout contract: head-major (h*dh + d) columns of w_fc / w_feat
    assert params["w_fc"].shape == (in_dim, H * head_dim)
    assert params["w_feat"].shape == (feat_dim, H * head_dim)

    # ---- grid-invariant precompute, hoisted out of the per-tile kernel body ----
    z = neighbor.astype(f32) @ params["w_fc"].astype(f32)                       # [Nsrc, H*dh]
    z3 = z.reshape(n_src, H, head_dim)
    e_src = jnp.einsum("shd,hd->hs", z3, params["a_z"].astype(f32))             # [H, Nsrc]

    # fold a_f into the edge projection: the [Ndst*Nsrc, H*dh] dfeat tensor is
    # never materialized, only per-head scalars.
    w_feat3 = params["w_feat"].reshape(feat_dim, H, head_dim).astype(f32)
    a_f = params["a_f"].astype(f32)
    wfeat_af = jnp.einsum("fhd,hd->fh", w_feat3, a_f)                            # [F, H]
    bfeat_af = jnp.sum(params["b_feat"].reshape(H, head_dim).astype(f32) * a_f, axis=-1)  # [H]

    # fused, Nsrc-lane-dense attention logits with bias, a_z.z and the adjacency
    # mask (-1e9) folded in — this is the only large tensor streamed to the kernel.
    e_edge = jnp.einsum("dsf,fh->hds", efeat.astype(f32), wfeat_af)              # [H, Ndst, Nsrc]
    neg = jnp.where(adj > 0, 0.0, -1e9).astype(f32)                              # [Ndst, Nsrc]
    logits = e_edge + bfeat_af[:, None, None] + e_src[:, None, :] + neg[None, :, :]

    # block-diagonal head-expanded z: zexp[h, s, :] = z[s] masked to head h's columns
    head_ids = jnp.arange(out_dim, dtype=jnp.int32) // head_dim
    head_onehot = (head_ids[None, :] == jnp.arange(H, dtype=jnp.int32)[:, None]).astype(f32)
    zexp = (head_onehot[:, None, :] * z[None, :, :]).astype(jnp.bfloat16)        # [H, Nsrc, out]

    # ---- generation-aware dst tiling (softmax rows are independent) ----
    td, vmem_limit = _pick_tile_and_vmem(n_dst, n_src, H, out_dim, ffn_dim, dst_tile)
    n_dst_pad = _round_up(n_dst, td)
    pad = n_dst_pad - n_dst
    origin_p = jnp.pad(origin, ((0, pad), (0, 0)))
    logits_p = jnp.pad(logits, ((0, 0), (0, pad), (0, 0))).astype(jnp.bfloat16)  # bf16 stream

    kernel = functools.partial(wswgat_kernel, num_heads=H)

    const_inputs = (zexp, params["ln_gamma"], params["ln_beta"],
                    params["w1"], params["b1"], params["w2"], params["b2"])

    def const_spec(x):
        return pl.BlockSpec(x.shape, lambda i, nd=x.ndim: (0,) * nd)

    in_specs = [
        pl.BlockSpec((H, td, n_src), lambda i: (0, i, 0)),   # fused attention logits (dst tile)
        pl.BlockSpec((td, out_dim), lambda i: (i, 0)),       # origin (dst tile)
    ] + [const_spec(x) for x in const_inputs]

    out_p = pl.pallas_call(
        kernel,
        out_shape=jax.ShapeDtypeStruct((n_dst_pad, out_dim), origin.dtype),
        grid=(n_dst_pad // td,),
        in_specs=in_specs,
        out_specs=pl.BlockSpec((td, out_dim), lambda i: (i, 0)),
        compiler_params=pltpu.CompilerParams(
            dimension_semantics=("parallel",),
            vmem_limit_bytes=vmem_limit),
    )(logits_p, origin_p, *const_inputs)

    return out_p[:n_dst]


def _reference(neighbor, origin, efeat, adj, params, num_heads):
    """Pure-JAX reference with the original (unfused) formulation."""
    out_dim = origin.shape[-1]
    dh = out_dim // num_heads
    z = neighbor @ params["w_fc"]
    nd, ns, fd = efeat.shape
    dfeat = (efeat.reshape(nd * ns, fd) @ params["w_feat"] + params["b_feat"]).reshape(nd, ns, out_dim)
    mask = adj > 0
    heads = []
    for h in range(num_heads):
        zh = z[:, h * dh:(h + 1) * dh]
        dfh = dfeat[:, :, h * dh:(h + 1) * dh]
        e = jnp.sum(zh * params["a_z"][h], -1)[None, :] + jnp.sum(dfh * params["a_f"][h], -1)
        e = jnp.where(e > 0, e, 0.01 * e)
        e = jnp.where(mask, e, -1e9)
        m = e.max(-1, keepdims=True)
        p = jnp.where(mask, jnp.exp(e - m), 0.0)
        heads.append((p / p.sum(-1, keepdims=True)) @ zh)
    gat = jnp.concatenate(heads, -1)
    hres = jnp.where(gat > 0, gat, jnp.exp(gat) - 1.0) + origin
    mu = hres.mean(-1, keepdims=True)
    var = ((hres - mu) ** 2).mean(-1, keepdims=True)
    xn = (hres - mu) / jnp.sqrt(var + 1e-6) * params["ln_gamma"] + params["ln_beta"]
    inter = _gelu(xn @ params["w1"] + params["b1"])
    return inter @ params["w2"] + params["b2"] + hres


if __name__ == "__main__":
    # Small shapes consistent with WSWGAT's forward (W2S):
    #   word nodes Nw=16 (neighbor, in_dim=32), sentence nodes Ns=8 (origin, out_dim=32)
    #   num_heads=4 (head_dim=8), feat_embed_size=8, ffn_inner_hidden_size=64
    Nw, Ns = 16, 8
    in_dim, out_dim = 32, 32
    num_heads, feat_embed_size, ffn_hidden = 4, 8, 64
    head_dim = out_dim // num_heads

    key = jax.random.PRNGKey(0)
    ks = jax.random.split(key, 12)

    w = jax.random.normal(ks[0], (Nw, in_dim), jnp.float32) * 0.5       # word node features
    s = jax.random.normal(ks[1], (Ns, out_dim), jnp.float32) * 0.5      # sentence node features
    efeat = jax.random.normal(ks[2], (Ns, Nw, feat_embed_size), jnp.float32) * 0.5
    adj = (jax.random.uniform(ks[3], (Ns, Nw)) < 0.5).astype(jnp.float32)
    adj = adj.at[:, 0].set(1.0)  # guarantee every sentence has >= 1 incoming word edge

    params = {
        "w_fc":     jax.random.normal(ks[4], (in_dim, num_heads * head_dim), jnp.float32) * 0.1,
        "w_feat":   jax.random.normal(ks[5], (feat_embed_size, num_heads * head_dim), jnp.float32) * 0.1,
        "b_feat":   jnp.zeros((1, num_heads * head_dim), jnp.float32),
        "a_z":      jax.random.normal(ks[6], (num_heads, head_dim), jnp.float32) * 0.1,
        "a_f":      jax.random.normal(ks[7], (num_heads, head_dim), jnp.float32) * 0.1,
        "ln_gamma": jnp.ones((1, out_dim), jnp.float32),
        "ln_beta":  jnp.zeros((1, out_dim), jnp.float32),
        "w1":       jax.random.normal(ks[8], (out_dim, ffn_hidden), jnp.float32) * 0.1,
        "b1":       jnp.zeros((1, ffn_hidden), jnp.float32),
        "w2":       jax.random.normal(ks[9], (ffn_hidden, out_dim), jnp.float32) * 0.1,
        "b2":       jnp.zeros((1, out_dim), jnp.float32),
    }

    out = wswgat_forward(w, s, efeat, adj, params, num_heads)
    jax.block_until_ready(out)
    assert out.shape == (Ns, out_dim) and jnp.all(jnp.isfinite(out))

    ref = _reference(w, s, efeat, adj, params, num_heads)
    # tolerance covers the bf16 logits/alpha/zexp streams vs the f32 reference
    assert jnp.allclose(out, ref, rtol=2e-2, atol=2e-2), float(jnp.max(jnp.abs(out - ref)))

    print("KERNEL_OK")
</pallas_src>

<mosaic_0001>
module attributes {stable_mosaic.version = 11 : i64} {
  func.func @wswgat_kernel(%arg0: i32, %arg1: memref<4x8x16xbf16, #tpu.memory_space<vmem>>, %arg2: memref<8x32xf32, #tpu.memory_space<vmem>>, %arg3: memref<4x16x32xbf16, #tpu.memory_space<vmem>>, %arg4: memref<1x32xf32, #tpu.memory_space<vmem>>, %arg5: memref<1x32xf32, #tpu.memory_space<vmem>>, %arg6: memref<32x64xf32, #tpu.memory_space<vmem>>, %arg7: memref<1x64xf32, #tpu.memory_space<vmem>>, %arg8: memref<64x32xf32, #tpu.memory_space<vmem>>, %arg9: memref<1x32xf32, #tpu.memory_space<vmem>>, %arg10: memref<8x32xf32, #tpu.memory_space<vmem>>) attributes {dimension_semantics = [#tpu.dimension_semantics<parallel>], iteration_bounds = array<i64: 1>, scalar_prefetch = 0 : i64, scratch_operands = 0 : i64, tpu.core_type = #tpu.core_type<tc>, window_params = [{transform_indices = @transform_0, window_bounds = array<i64: 4, 8, 16>}, {transform_indices = @transform_1, window_bounds = array<i64: 8, 32>}, {pipeline_mode = #tpu.pipeline_mode<synchronous>, transform_indices = @transform_2, window_bounds = array<i64: 4, 16, 32>}, {pipeline_mode = #tpu.pipeline_mode<synchronous>, transform_indices = @transform_3, window_bounds = array<i64: 1, 32>}, {pipeline_mode = #tpu.pipeline_mode<synchronous>, transform_indices = @transform_4, window_bounds = array<i64: 1, 32>}, {pipeline_mode = #tpu.pipeline_mode<synchronous>, transform_indices = @transform_5, window_bounds = array<i64: 32, 64>}, {pipeline_mode = #tpu.pipeline_mode<synchronous>, transform_indices = @transform_6, window_bounds = array<i64: 1, 64>}, {pipeline_mode = #tpu.pipeline_mode<synchronous>, transform_indices = @transform_7, window_bounds = array<i64: 64, 32>}, {pipeline_mode = #tpu.pipeline_mode<synchronous>, transform_indices = @transform_8, window_bounds = array<i64: 1, 32>}, {transform_indices = @transform_9, window_bounds = array<i64: 8, 32>}]} {
    %c0 = arith.constant 0 : index
    %c0_0 = arith.constant 0 : index
    %c0_1 = arith.constant 0 : index
    %0 = vector.load %arg1[%c0, %c0_0, %c0_1] : memref<4x8x16xbf16, #tpu.memory_space<vmem>>, vector<4x8x16xbf16>
    %1 = arith.extf %0 : vector<4x8x16xbf16> to vector<4x8x16xf32>
    %cst = arith.constant 0.000000e+00 : f32
    %2 = vector.broadcast %cst : f32 to vector<4x8x16xf32>
    %3 = arith.cmpf ogt, %1, %2 : vector<4x8x16xf32>
    %cst_2 = arith.constant 0.00999999977 : f32
    %4 = vector.broadcast %cst_2 : f32 to vector<4x8x16xf32>
    %5 = arith.mulf %4, %1 : vector<4x8x16xf32>
    %6 = arith.select %3, %1, %5 : vector<4x8x16xi1>, vector<4x8x16xf32>
    %cst_3 = arith.constant dense<0xFF800000> : vector<4x8xf32>
    %7 = vector.multi_reduction <maximumf>, %6, %cst_3 [2] : vector<4x8x16xf32> to vector<4x8xf32>
    %8 = vector.shape_cast %7 : vector<4x8xf32> to vector<4x8x1xf32>
    %9 = vector.broadcast %8 : vector<4x8x1xf32> to vector<4x8x16xf32>
    %10 = arith.subf %6, %9 : vector<4x8x16xf32>
    %11 = math.exp %10 : vector<4x8x16xf32>
    %cst_4 = arith.constant dense<0.000000e+00> : vector<4x8xf32>
    %12 = vector.multi_reduction <add>, %11, %cst_4 [2] : vector<4x8x16xf32> to vector<4x8xf32>
    %13 = vector.shape_cast %12 : vector<4x8xf32> to vector<4x8x1xf32>
    %cst_5 = arith.constant 1.000000e+00 : f32
    %14 = vector.broadcast %cst_5 : f32 to vector<4x8x1xf32>
    %15 = arith.divf %14, %13 : vector<4x8x1xf32>
    %16 = vector.broadcast %15 : vector<4x8x1xf32> to vector<4x8x16xf32>
    %17 = arith.mulf %11, %16 : vector<4x8x16xf32>
    %18 = arith.truncf %17 : vector<4x8x16xf32> to vector<4x8x16xbf16>
    %19 = vector.extract_strided_slice %18 {offsets = [0, 0, 0], sizes = [1, 8, 16], strides = [1, 1, 1]} : vector<4x8x16xbf16> to vector<1x8x16xbf16>
    %20 = vector.shape_cast %19 : vector<1x8x16xbf16> to vector<8x16xbf16>
    %c0_6 = arith.constant 0 : index
    %c0_7 = arith.constant 0 : index
    %c0_8 = arith.constant 0 : index
    %21 = vector.load %arg3[%c0_6, %c0_7, %c0_8] : memref<4x16x32xbf16, #tpu.memory_space<vmem>>, vector<1x16x32xbf16>
    %22 = vector.shape_cast %21 : vector<1x16x32xbf16> to vector<16x32xbf16>
    %cst_9 = arith.constant dense<0.000000e+00> : vector<8x32xf32>
    %23 = tpu.matmul %20, %22, %cst_9 {dimension_numbers = #tpu.dot_dimension_numbers<[1], [0], [0], [1], [0, 0, 1, 1], [], []>} : vector<8x16xbf16>, vector<16x32xbf16>, vector<8x32xf32> -> vector<8x32xf32>
    %24 = vector.extract_strided_slice %18 {offsets = [1, 0, 0], sizes = [1, 8, 16], strides = [1, 1, 1]} : vector<4x8x16xbf16> to vector<1x8x16xbf16>
    %25 = vector.shape_cast %24 : vector<1x8x16xbf16> to vector<8x16xbf16>
    %c1 = arith.constant 1 : index
    %c0_10 = arith.constant 0 : index
    %c0_11 = arith.constant 0 : index
    %26 = vector.load %arg3[%c1, %c0_10, %c0_11] : memref<4x16x32xbf16, #tpu.memory_space<vmem>>, vector<1x16x32xbf16>
    %27 = vector.shape_cast %26 : vector<1x16x32xbf16> to vector<16x32xbf16>
    %cst_12 = arith.constant dense<0.000000e+00> : vector<8x32xf32>
    %28 = tpu.matmul %25, %27, %cst_12 {dimension_numbers = #tpu.dot_dimension_numbers<[1], [0], [0], [1], [0, 0, 1, 1], [], []>} : vector<8x16xbf16>, vector<16x32xbf16>, vector<8x32xf32> -> vector<8x32xf32>
    %29 = arith.addf %23, %28 : vector<8x32xf32>
    %30 = vector.extract_strided_slice %18 {offsets = [2, 0, 0], sizes = [1, 8, 16], strides = [1, 1, 1]} : vector<4x8x16xbf16> to vector<1x8x16xbf16>
    %31 = vector.shape_cast %30 : vector<1x8x16xbf16> to vector<8x16xbf16>
    %c2 = arith.constant 2 : index
    %c0_13 = arith.constant 0 : index
    %c0_14 = arith.constant 0 : index
    %32 = vector.load %arg3[%c2, %c0_13, %c0_14] : memref<4x16x32xbf16, #tpu.memory_space<vmem>>, vector<1x16x32xbf16>
    %33 = vector.shape_cast %32 : vector<1x16x32xbf16> to vector<16x32xbf16>
    %cst_15 = arith.constant dense<0.000000e+00> : vector<8x32xf32>
    %34 = tpu.matmul %31, %33, %cst_15 {dimension_numbers = #tpu.dot_dimension_numbers<[1], [0], [0], [1], [0, 0, 1, 1], [], []>} : vector<8x16xbf16>, vector<16x32xbf16>, vector<8x32xf32> -> vector<8x32xf32>
    %35 = arith.addf %29, %34 : vector<8x32xf32>
    %36 = vector.extract_strided_slice %18 {offsets = [3, 0, 0], sizes = [1, 8, 16], strides = [1, 1, 1]} : vector<4x8x16xbf16> to vector<1x8x16xbf16>
    %37 = vector.shape_cast %36 : vector<1x8x16xbf16> to vector<8x16xbf16>
    %c3 = arith.constant 3 : index
    %c0_16 = arith.constant 0 : index
    %c0_17 = arith.constant 0 : index
    %38 = vector.load %arg3[%c3, %c0_16, %c0_17] : memref<4x16x32xbf16, #tpu.memory_space<vmem>>, vector<1x16x32xbf16>
    %39 = vector.shape_cast %38 : vector<1x16x32xbf16> to vector<16x32xbf16>
    %cst_18 = arith.constant dense<0.000000e+00> : vector<8x32xf32>
    %40 = tpu.matmul %37, %39, %cst_18 {dimension_numbers = #tpu.dot_dimension_numbers<[1], [0], [0], [1], [0, 0, 1, 1], [], []>} : vector<8x16xbf16>, vector<16x32xbf16>, vector<8x32xf32> -> vector<8x32xf32>
    %41 = arith.addf %35, %40 : vector<8x32xf32>
    %cst_19 = arith.constant 0.000000e+00 : f32
    %42 = vector.broadcast %cst_19 : f32 to vector<8x32xf32>
    %43 = arith.cmpf ogt, %41, %42 : vector<8x32xf32>
    %44 = math.exp %41 : vector<8x32xf32>
    %cst_20 = arith.constant 1.000000e+00 : f32
    %45 = vector.broadcast %cst_20 : f32 to vector<8x32xf32>
    %46 = arith.subf %44, %45 : vector<8x32xf32>
    %47 = arith.select %43, %41, %46 : vector<8x32xi1>, vector<8x32xf32>
    %c0_21 = arith.constant 0 : index
    %c0_22 = arith.constant 0 : index
    %48 = vector.load %arg2[%c0_21, %c0_22] : memref<8x32xf32, #tpu.memory_space<vmem>>, vector<8x32xf32>
    %49 = arith.addf %47, %48 : vector<8x32xf32>
    %cst_23 = arith.constant dense<0.000000e+00> : vector<8xf32>
    %50 = vector.multi_reduction <add>, %49, %cst_23 [1] : vector<8x32xf32> to vector<8xf32>
    %51 = vector.shape_cast %50 : vector<8xf32> to vector<8x1xf32>
    %cst_24 = arith.constant 3.200000e+01 : f32
    %52 = vector.broadcast %cst_24 : f32 to vector<8x1xf32>
    %53 = arith.divf %51, %52 : vector<8x1xf32>
    %54 = vector.broadcast %53 : vector<8x1xf32> to vector<8x32xf32>
    %55 = arith.subf %49, %54 : vector<8x32xf32>
    %56 = arith.mulf %55, %55 : vector<8x32xf32>
    %cst_25 = arith.constant dense<0.000000e+00> : vector<8xf32>
    %57 = vector.multi_reduction <add>, %56, %cst_25 [1] : vector<8x32xf32> to vector<8xf32>
    %58 = vector.shape_cast %57 : vector<8xf32> to vector<8x1xf32>
    %cst_26 = arith.constant 3.200000e+01 : f32
    %59 = vector.broadcast %cst_26 : f32 to vector<8x1xf32>
    %60 = arith.divf %58, %59 : vector<8x1xf32>
    %61 = vector.broadcast %53 : vector<8x1xf32> to vector<8x32xf32>
    %62 = arith.subf %49, %61 : vector<8x32xf32>
    %cst_27 = arith.constant 9.99999997E-7 : f32
    %63 = vector.broadcast %cst_27 : f32 to vector<8x1xf32>
    %64 = arith.addf %60, %63 : vector<8x1xf32>
    %65 = math.rsqrt %64 : vector<8x1xf32>
    %66 = vector.broadcast %65 : vector<8x1xf32> to vector<8x32xf32>
    %67 = arith.mulf %62, %66 : vector<8x32xf32>
    %c0_28 = arith.constant 0 : index
    %c0_29 = arith.constant 0 : index
    %68 = vector.load %arg4[%c0_28, %c0_29] : memref<1x32xf32, #tpu.memory_space<vmem>>, vector<1x32xf32>
    %69 = vector.broadcast %68 : vector<1x32xf32> to vector<8x32xf32>
    %70 = arith.mulf %67, %69 : vector<8x32xf32>
    %c0_30 = arith.constant 0 : index
    %c0_31 = arith.constant 0 : index
    %71 = vector.load %arg5[%c0_30, %c0_31] : memref<1x32xf32, #tpu.memory_space<vmem>>, vector<1x32xf32>
    %72 = vector.broadcast %71 : vector<1x32xf32> to vector<8x32xf32>
    %73 = arith.addf %70, %72 : vector<8x32xf32>
    %c0_32 = arith.constant 0 : index
    %c0_33 = arith.constant 0 : index
    %74 = vector.load %arg6[%c0_32, %c0_33] : memref<32x64xf32, #tpu.memory_space<vmem>>, vector<32x64xf32>
    %cst_34 = arith.constant dense<0.000000e+00> : vector<8x64xf32>
    %75 = tpu.matmul %73, %74, %cst_34 {dimension_numbers = #tpu.dot_dimension_numbers<[1], [0], [0], [1], [0, 0, 1, 1], [], []>} : vector<8x32xf32>, vector<32x64xf32>, vector<8x64xf32> -> vector<8x64xf32>
    %c0_35 = arith.constant 0 : index
    %c0_36 = arith.constant 0 : index
    %76 = vector.load %arg7[%c0_35, %c0_36] : memref<1x64xf32, #tpu.memory_space<vmem>>, vector<1x64xf32>
    %77 = vector.broadcast %76 : vector<1x64xf32> to vector<8x64xf32>
    %78 = arith.addf %75, %77 : vector<8x64xf32>
    %cst_37 = arith.constant 5.000000e-01 : f32
    %79 = vector.broadcast %cst_37 : f32 to vector<8x64xf32>
    %80 = arith.mulf %79, %78 : vector<8x64xf32>
    %81 = arith.mulf %78, %78 : vector<8x64xf32>
    %82 = arith.mulf %78, %81 : vector<8x64xf32>
    %cst_38 = arith.constant 4.471500e-02 : f32
    %83 = vector.broadcast %cst_38 : f32 to vector<8x64xf32>
    %84 = arith.mulf %83, %82 : vector<8x64xf32>
    %85 = arith.addf %78, %84 : vector<8x64xf32>
    %cst_39 = arith.constant 0.797884583 : f32
    %86 = vector.broadcast %cst_39 : f32 to vector<8x64xf32>
    %87 = arith.mulf %86, %85 : vector<8x64xf32>
    %88 = math.tanh %87 : vector<8x64xf32>
    %cst_40 = arith.constant 1.000000e+00 : f32
    %89 = vector.broadcast %cst_40 : f32 to vector<8x64xf32>
    %90 = arith.addf %89, %88 : vector<8x64xf32>
    %91 = arith.mulf %80, %90 : vector<8x64xf32>
    %c0_41 = arith.constant 0 : index
    %c0_42 = arith.constant 0 : index
    %92 = vector.load %arg8[%c0_41, %c0_42] : memref<64x32xf32, #tpu.memory_space<vmem>>, vector<64x32xf32>
    %cst_43 = arith.constant dense<0.000000e+00> : vector<8x32xf32>
    %93 = tpu.matmul %91, %92, %cst_43 {dimension_numbers = #tpu.dot_dimension_numbers<[1], [0], [0], [1], [0, 0, 1, 1], [], []>} : vector<8x64xf32>, vector<64x32xf32>, vector<8x32xf32> -> vector<8x32xf32>
    %c0_44 = arith.constant 0 : index
    %c0_45 = arith.constant 0 : index
    %94 = vector.load %arg9[%c0_44, %c0_45] : memref<1x32xf32, #tpu.memory_space<vmem>>, vector<1x32xf32>
    %95 = vector.broadcast %94 : vector<1x32xf32> to vector<8x32xf32>
    %96 = arith.addf %93, %95 : vector<8x32xf32>
    %97 = arith.addf %96, %49 : vector<8x32xf32>
    %c0_46 = arith.constant 0 : index
    %c0_47 = arith.constant 0 : index
    %98 = vector.load %arg10[%c0_46, %c0_47] : memref<8x32xf32, #tpu.memory_space<vmem>>, vector<8x32xf32>
    tpu.vector_store %arg10[%c0_46, %c0_47], %97 {strides = array<i32>} : memref<8x32xf32, #tpu.memory_space<vmem>>, vector<8x32xf32>,
    return
  }
  func.func @transform_0(%arg0: i32) -> (i32, i32, i32) {
    %c0_i32 = arith.constant 0 : i32
    %c0_i32_0 = arith.constant 0 : i32
    %c0_i32_1 = arith.constant 0 : i32
    return %c0_i32, %arg0, %c0_i32_0 : i32, i32, i32
  }
  func.func @transform_1(%arg0: i32) -> (i32, i32) {
    %c0_i32 = arith.constant 0 : i32
    %c0_i32_0 = arith.constant 0 : i32
    return %arg0, %c0_i32 : i32, i32
  }
  func.func @transform_2(%arg0: i32) -> (i32, i32, i32) {
    %c0_i32 = arith.constant 0 : i32
    %c0_i32_0 = arith.constant 0 : i32
    %c0_i32_1 = arith.constant 0 : i32
    %c0_i32_2 = arith.constant 0 : i32
    return %c0_i32, %c0_i32_0, %c0_i32_1 : i32, i32, i32
  }
  func.func @transform_3(%arg0: i32) -> (i32, i32) {
    %c0_i32 = arith.constant 0 : i32
    %c0_i32_0 = arith.constant 0 : i32
    %c0_i32_1 = arith.constant 0 : i32
    return %c0_i32, %c0_i32_0 : i32, i32
  }
  func.func @transform_4(%arg0: i32) -> (i32, i32) {
    %c0_i32 = arith.constant 0 : i32
    %c0_i32_0 = arith.constant 0 : i32
    %c0_i32_1 = arith.constant 0 : i32
    return %c0_i32, %c0_i32_0 : i32, i32
  }
  func.func @transform_5(%arg0: i32) -> (i32, i32) {
    %c0_i32 = arith.constant 0 : i32
    %c0_i32_0 = arith.constant 0 : i32
    %c0_i32_1 = arith.constant 0 : i32
    return %c0_i32, %c0_i32_0 : i32, i32
  }
  func.func @transform_6(%arg0: i32) -> (i32, i32) {
    %c0_i32 = arith.constant 0 : i32
    %c0_i32_0 = arith.constant 0 : i32
    %c0_i32_1 = arith.constant 0 : i32
    return %c0_i32, %c0_i32_0 : i32, i32
  }
  func.func @transform_7(%arg0: i32) -> (i32, i32) {
    %c0_i32 = arith.constant 0 : i32
    %c0_i32_0 = arith.constant 0 : i32
    %c0_i32_1 = arith.constant 0 : i32
    return %c0_i32, %c0_i32_0 : i32, i32
  }
  func.func @transform_8(%arg0: i32) -> (i32, i32) {
    %c0_i32 = arith.constant 0 : i32
    %c0_i32_0 = arith.constant 0 : i32
    %c0_i32_1 = arith.constant 0 : i32
    return %c0_i32, %c0_i32_0 : i32, i32
  }
  func.func @transform_9(%arg0: i32) -> (i32, i32) {
    %c0_i32 = arith.constant 0 : i32
    %c0_i32_0 = arith.constant 0 : i32
    return %arg0, %c0_i32 : i32, i32
  }
}

</mosaic_0001>

<llo_original>
// kernel: tpu_custom_call.1
$region0: #{tpu_custom_call.1}
  #allocation0 [shape = 'u32[]', space=smem, size = 0x4, offset = 0x4, fixed_abs, tag = 'smem constant byte address 0x4 - core index']
  #allocation1 [shape = 'u32[144,128]{1,0:T(1,128)}', space=vmem, size = 0x12000, scoped, tag = 'internal scratch']
  %s0 = inlined_call_operand.vmem [shape: bf16[4,8,16], index: 0, kind: input, shape index: {}]
  %s1 = inlined_call_operand.vmem [shape: f32[8,32], index: 1, kind: input, shape index: {}]
  %s2 = inlined_call_operand.vmem [shape: bf16[4,16,32], index: 2, kind: input, shape index: {}]
  %s3 = inlined_call_operand.vmem [shape: f32[1,32], index: 3, kind: input, shape index: {}]
  %s4 = inlined_call_operand.vmem [shape: f32[1,32], index: 4, kind: input, shape index: {}]
  %s5 = inlined_call_operand.vmem [shape: f32[32,64], index: 5, kind: input, shape index: {}]
  %s6 = inlined_call_operand.vmem [shape: f32[1,64], index: 6, kind: input, shape index: {}]
  %s7 = inlined_call_operand.vmem [shape: f32[64,32], index: 7, kind: input, shape index: {}]
  %s8 = inlined_call_operand.vmem [shape: f32[1,32], index: 8, kind: input, shape index: {}]
  %s9 = inlined_call_operand.hbm [shape: f32[8,32], index: 9, kind: output, shape index: {}]
  %s10 = sld [smem:[#allocation0]]
  $region46: #{tpu_custom_call.1} parent=0
    _
  %s12 = ssub.s32 1, %s10
  %s13 = scalar_select 0, %s12, %s10
  $region1: #{tpu_custom_call.1} parent=0
    #allocation2 [shape = 'u8[4096]{0}', space=vmem, size = 0x1000, scoped, tag = 'output window, operand 0, single buffered']
    #allocation3 [shape = 's32[1]{0}', space=sflag, size = 0x4, scoped, tag = 'scoped memory for tpu_custom_call.1']
    %14 = vsyncpa [#allocation3], 0
    // Predicated region
    $region2: #{tpu_custom_call.1} parent=1 // pred_check
      _
    $region3: #{tpu_custom_call.1} parent=1 // pred_check_branch
      %16 = sbr.rel (0) target = $region5
    $region4: #{tpu_custom_call.1} parent=1 // pred_region
      _
    $region5: #{tpu_custom_call.1} parent=1 // pred_fallthru
      _
    // Predicated region
    $region6: #{tpu_custom_call.1} parent=1 // pred_check
      _
    $region7: #{tpu_custom_call.1} parent=1 // pred_check_branch
      %18 = sbr.rel (0) target = $region9
    $region8: #{tpu_custom_call.1} parent=1 // pred_region
      _
    $region9: #{tpu_custom_call.1} parent=1 // pred_fallthru
      _
    // Predicated region
    $region10: #{tpu_custom_call.1} parent=1 // pred_check
      _
    $region11: #{tpu_custom_call.1} parent=1 // pred_check_branch
      %20 = sbr.rel (0) target = $region13
    $region12: #{tpu_custom_call.1} parent=1 // pred_region
      _
    $region13: #{tpu_custom_call.1} parent=1 // pred_fallthru
      _
    // Predicated region
    $region14: #{tpu_custom_call.1} parent=1 // pred_check
      _
    $region15: #{tpu_custom_call.1} parent=1 // pred_check_branch
      %22 = sbr.rel (0) target = $region17
    $region16: #{tpu_custom_call.1} parent=1 // pred_region
      _
    $region17: #{tpu_custom_call.1} parent=1 // pred_fallthru
      _
    // Predicated region
    $region18: #{tpu_custom_call.1} parent=1 // pred_check
      _
    $region19: #{tpu_custom_call.1} parent=1 // pred_check_branch
      %24 = sbr.rel (0) target = $region21
    $region20: #{tpu_custom_call.1} parent=1 // pred_region
      _
    $region21: #{tpu_custom_call.1} parent=1 // pred_fallthru
      _
    // Predicated region
    $region22: #{tpu_custom_call.1} parent=1 // pred_check
      _
    $region23: #{tpu_custom_call.1} parent=1 // pred_check_branch
      %26 = sbr.rel (0) target = $region25
    $region24: #{tpu_custom_call.1} parent=1 // pred_region
      _
    $region25: #{tpu_custom_call.1} parent=1 // pred_fallthru
      _
    // Predicated region
    $region26: #{tpu_custom_call.1} parent=1 // pred_check
      _
    $region27: #{tpu_custom_call.1} parent=1 // pred_check_branch
      %28 = sbr.rel (0) target = $region29
    $region28: #{tpu_custom_call.1} parent=1 // pred_region
      _
    $region29: #{tpu_custom_call.1} parent=1 // pred_fallthru
      _
    // Predicated region
    $region30: #{tpu_custom_call.1} parent=1 // pred_check
      _
    $region31: #{tpu_custom_call.1} parent=1 // pred_check_branch
      %30 = sbr.rel (0) target = $region33
    $region32: #{tpu_custom_call.1} parent=1 // pred_region
      _
    $region33: #{tpu_custom_call.1} parent=1 // pred_fallthru
      _
    // Predicated region
    $region34: #{tpu_custom_call.1} parent=1 // pred_check
      _
    $region35: #{tpu_custom_call.1} parent=1 // pred_check_branch
      %32 = sbr.rel (0) target = $region37
    $region36: #{tpu_custom_call.1} parent=1 // pred_region
      _
    $region37: #{tpu_custom_call.1} parent=1 // pred_fallthru
      _
    %v34 = vld [vmem:[%s0] sm:$0xf]
    %v35 = vld [vmem:[%s0 + $0x4] sm:$0xf]
    %v36 = vld [vmem:[%s0 + $0x8] sm:$0xf]
    %v37 = vld [vmem:[%s0 + $0xc] sm:$0xf]
    %v38 = vunpack.c.l.bf16 %v34
    %v39 = vunpack.c.l.bf16 %v35
    %v40 = vunpack.c.l.bf16 %v36
    %v41 = vunpack.c.l.bf16 %v37
    %vm42 = vcmp.gt.f32.partialorder %v38, 0.0
    %vm43 = vcmp.gt.f32.partialorder %v39, 0.0
    %vm44 = vcmp.gt.f32.partialorder %v40, 0.0
    %vm45 = vcmp.gt.f32.partialorder %v41, 0.0
    %v46 = vmul.f32 %v38, 0.01
    %v47 = vmul.f32 %v39, 0.01
    %v48 = vmul.f32 %v40, 0.01
    %v49 = vmul.f32 %v41, 0.01
    %v50 = vsel %vm42, %v38, %v46
    %v51 = vsel %vm43, %v39, %v47
    %v52 = vsel %vm44, %v40, %v48
    %v53 = vsel %vm45, %v41, %v49
    %vm54 = vcmask 130048
    %v55 = vsel %vm54, %v50, -inf
    %56 = vmax.xlane.f32.xlu0 %v55
    %v57 = vpop.xlane.xlu0 %56
    %v58 = vsel %vm54, %v51, -inf
    %59 = vmax.xlane.f32.xlu0 %v58
    %v60 = vpop.xlane.xlu0 %59
    %v61 = vsel %vm54, %v52, -inf
    %62 = vmax.xlane.f32.xlu0 %v61
    %v63 = vpop.xlane.xlu0 %62
    %v64 = vsel %vm54, %v53, -inf
    %65 = vmax.xlane.f32.xlu0 %v64
    %v66 = vpop.xlane.xlu0 %65
    %v67 = vsub.f32 %v50, %v57
    %v68 = vsub.f32 %v51, %v60
    %v69 = vsub.f32 %v52, %v63
    %v70 = vsub.f32 %v53, %v66
    %v71 = vmul.f32 %v67, 1.442695
    %v72 = vpow.pop %v71
    %v73 = vmul.f32 %v68, 1.442695
    %v74 = vpow.pop %v73
    %v75 = vmul.f32 %v69, 1.442695
    %v76 = vpow.pop %v75
    %v77 = vmul.f32 %v70, 1.442695
    %v78 = vpow.pop %v77
    %v79 = vsel %vm54, %v72, 0.0
    %80 = vadd.xlane.f32.xlu0 %v79
    %v81 = vpop.xlane.xlu0 %80
    %v82 = vsel %vm54, %v74, 0.0
    %83 = vadd.xlane.f32.xlu0 %v82
    %v84 = vpop.xlane.xlu0 %83
    %v85 = vsel %vm54, %v76, 0.0
    %86 = vadd.xlane.f32.xlu0 %v85
    %v87 = vpop.xlane.xlu0 %86
    %v88 = vsel %vm54, %v78, 0.0
    %89 = vadd.xlane.f32.xlu0 %v88
    %v90 = vpop.xlane.xlu0 %89
    %v91 = vrcp.pop %v81
    %v92 = vmul.f32 1.0, %v91
    %v93 = vrcp.pop %v84
    %v94 = vmul.f32 1.0, %v93
    %v95 = vrcp.pop %v87
    %v96 = vmul.f32 1.0, %v95
    %v97 = vrcp.pop %v90
    %v98 = vmul.f32 1.0, %v97
    %v99 = vmul.f32 %v72, %v92
    %v100 = vmul.f32 %v74, %v94
    %v101 = vmul.f32 %v76, %v96
    %v102 = vmul.f32 %v78, %v98
    %v103 = vpack.c.bf16 %v99, %v99
    %v104 = vpack.c.bf16 %v100, %v100
    %v105 = vpack.c.bf16 %v101, %v101
    %v106 = vpack.c.bf16 %v102, %v102
    %v107 = vld [vmem:[%s2] sm:$0xf]
    %v108 = vld [vmem:[%s2 + $0x4] sm:$0xf]
    %s109 = scalar_lea.vmem %s2, 8
    %v110 = vld [vmem:[%s109] sm:$0xf]
    %v111 = vld [vmem:[%s109 + $0x4] sm:$0xf]
    %v114 = vunpack.c.l.b16 %v110
    %v115 = vunpack.c.l.b16 %v111
    %v116 = vpack.c.b16 %v115, %v114
    %v119 = vsel %vm54, %v104, 0
    %121 = vmatprep.subr.bf16.mxu0 0
    %122 = vmatpush1.bf16.msra.mxu0 %v116
    %123 = vmatprep.subr.bf16.mxu0 0
    %124 = vmatpush1.bf16.msra.mxu0 0
    %125 = vmatprep.subr.bf16.mxu0 0
    %126 = vmatpush1.bf16.msra.mxu0 0
    %127 = vmatprep.subr.bf16.mxu0 0
    %128 = vmatpush1.bf16.msra.mxu0 0
    %129 = vmatprep.subr.bf16.mxu0 0
    %130 = vmatpush1.bf16.msra.mxu0 0
    %131 = vmatprep.subr.bf16.mxu0 0
    %132 = vmatpush1.bf16.msra.mxu0 0
    %133 = vmatprep.subr.bf16.mxu0 0
    %134 = vmatpush1.bf16.msra.mxu0 0
    %135 = vmatprep.subr.bf16.mxu0 0
    %136 = vmatpush1.bf16.msra.mxu0 0
    %137 = vmatprep.subr.bf16.mxu0 0
    %138 = vmatpush1.bf16.msra.mxu0 0
    %139 = vmatprep.subr.bf16.mxu0 0
    %140 = vmatpush1.bf16.msra.mxu0 0
    %141 = vmatprep.subr.bf16.mxu0 0
    %142 = vmatpush1.bf16.msra.mxu0 0
    %143 = vmatprep.subr.bf16.mxu0 0
    %144 = vmatpush1.bf16.msra.mxu0 0
    %145 = vmatprep.subr.bf16.mxu0 0
    %146 = vmatpush1.bf16.msra.mxu0 0
    %147 = vmatprep.subr.bf16.mxu0 0
    %148 = vmatpush1.bf16.msra.mxu0 0
    %149 = vmatprep.subr.bf16.mxu0 0
    %150 = vmatpush1.bf16.msra.mxu0 0
    %151 = vmatprep.subr.bf16.mxu0 0
    %152 = vmatpush1.bf16.msra.mxu0 0
    %153 = vmatprep.mubr.bf16.mxu0 0
    %154 = vmatmul.mubr.bf16.gmra.mrb[0].mxu0 %v119
    %v155 = vpop.f32.mrb[0].mxu0
    %v156 = vadd.f32 0.0, %v155
    %v157 = vpop.f32.mrb[0].mxu0
    %v158 = vpop.f32.mrb[0].mxu0
    %v159 = vpop.f32.mrb[0].mxu0
    %160 = vdwg.mxu0
    %v163 = vunpack.c.l.b16 %v107
    %v164 = vunpack.c.l.b16 %v108
    %v165 = vpack.c.b16 %v164, %v163
    %v168 = vsel %vm54, %v103, 0
    %170 = vmatprep.subr.bf16.mxu0 0
    %171 = vmatpush1.bf16.msra.mxu0 %v165
    %172 = vmatprep.subr.bf16.mxu0 0
    %173 = vmatpush1.bf16.msra.mxu0 0
    %174 = vmatprep.subr.bf16.mxu0 0
    %175 = vmatpush1.bf16.msra.mxu0 0
    %176 = vmatprep.subr.bf16.mxu0 0
    %177 = vmatpush1.bf16.msra.mxu0 0
    %178 = vmatprep.subr.bf16.mxu0 0
    %179 = vmatpush1.bf16.msra.mxu0 0
    %180 = vmatprep.subr.bf16.mxu0 0
    %181 = vmatpush1.bf16.msra.mxu0 0
    %182 = vmatprep.subr.bf16.mxu0 0
    %183 = vmatpush1.bf16.msra.mxu0 0
    %184 = vmatprep.subr.bf16.mxu0 0
    %185 = vmatpush1.bf16.msra.mxu0 0
    %186 = vmatprep.subr.bf16.mxu0 0
    %187 = vmatpush1.bf16.msra.mxu0 0
    %188 = vmatprep.subr.bf16.mxu0 0
    %189 = vmatpush1.bf16.msra.mxu0 0
    %190 = vmatprep.subr.bf16.mxu0 0
    %191 = vmatpush1.bf16.msra.mxu0 0
    %192 = vmatprep.subr.bf16.mxu0 0
    %193 = vmatpush1.bf16.msra.mxu0 0
    %194 = vmatprep.subr.bf16.mxu0 0
    %195 = vmatpush1.bf16.msra.mxu0 0
    %196 = vmatprep.subr.bf16.mxu0 0
    %197 = vmatpush1.bf16.msra.mxu0 0
    %198 = vmatprep.subr.bf16.mxu0 0
    %199 = vmatpush1.bf16.msra.mxu0 0
    %200 = vmatprep.subr.bf16.mxu0 0
    %201 = vmatpush1.bf16.msra.mxu0 0
    %202 = vmatprep.mubr.bf16.mxu0 0
    %203 = vmatmul.mubr.bf16.gmra.mrb[0].mxu0 %v168
    %v204 = vpop.f32.mrb[0].mxu0
    %v205 = vadd.f32 %v156, %v204
    %v206 = vpop.f32.mrb[0].mxu0
    %v207 = vpop.f32.mrb[0].mxu0
    %v208 = vpop.f32.mrb[0].mxu0
    %209 = vdwg.mxu0
    %s210 = scalar_lea.vmem %s2, 16
    %v211 = vld [vmem:[%s210] sm:$0xf]
    %v212 = vld [vmem:[%s210 + $0x4] sm:$0xf]
    %v215 = vunpack.c.l.b16 %v211
    %v216 = vunpack.c.l.b16 %v212
    %v217 = vpack.c.b16 %v216, %v215
    %v220 = vsel %vm54, %v105, 0
    %222 = vmatprep.subr.bf16.mxu0 0
    %223 = vmatpush1.bf16.msra.mxu0 %v217
    %224 = vmatprep.subr.bf16.mxu0 0
    %225 = vmatpush1.bf16.msra.mxu0 0
    %226 = vmatprep.subr.bf16.mxu0 0
    %227 = vmatpush1.bf16.msra.mxu0 0
    %228 = vmatprep.subr.bf16.mxu0 0
    %229 = vmatpush1.bf16.msra.mxu0 0
    %230 = vmatprep.subr.bf16.mxu0 0
    %231 = vmatpush1.bf16.msra.mxu0 0
    %232 = vmatprep.subr.bf16.mxu0 0
    %233 = vmatpush1.bf16.msra.mxu0 0
    %234 = vmatprep.subr.bf16.mxu0 0
    %235 = vmatpush1.bf16.msra.mxu0 0
    %236 = vmatprep.subr.bf16.mxu0 0
    %237 = vmatpush1.bf16.msra.mxu0 0
    %238 = vmatprep.subr.bf16.mxu0 0
    %239 = vmatpush1.bf16.msra.mxu0 0
    %240 = vmatprep.subr.bf16.mxu0 0
    %241 = vmatpush1.bf16.msra.mxu0 0
    %242 = vmatprep.subr.bf16.mxu0 0
    %243 = vmatpush1.bf16.msra.mxu0 0
    %244 = vmatprep.subr.bf16.mxu0 0
    %245 = vmatpush1.bf16.msra.mxu0 0
    %246 = vmatprep.subr.bf16.mxu0 0
    %247 = vmatpush1.bf16.msra.mxu0 0
    %248 = vmatprep.subr.bf16.mxu0 0
    %249 = vmatpush1.bf16.msra.mxu0 0
    %250 = vmatprep.subr.bf16.mxu0 0
    %251 = vmatpush1.bf16.msra.mxu0 0
    %252 = vmatprep.subr.bf16.mxu0 0
    %253 = vmatpush1.bf16.msra.mxu0 0
    %254 = vmatprep.mubr.bf16.mxu0 0
    %255 = vmatmul.mubr.bf16.gmra.mrb[0].mxu0 %v220
    %v256 = vpop.f32.mrb[0].mxu0
    %v257 = vadd.f32 0.0, %v256
    %v258 = vpop.f32.mrb[0].mxu0
    %v259 = vpop.f32.mrb[0].mxu0
    %v260 = vpop.f32.mrb[0].mxu0
    %261 = vdwg.mxu0
    %v262 = vadd.f32 %v205, %v257
    %s263 = scalar_lea.vmem %s2, 24
    %v264 = vld [vmem:[%s263] sm:$0xf]
    %v265 = vld [vmem:[%s263 + $0x4] sm:$0xf]
    %v268 = vunpack.c.l.b16 %v264
    %v269 = vunpack.c.l.b16 %v265
    %v270 = vpack.c.b16 %v269, %v268
    %v273 = vsel %vm54, %v106, 0
    %275 = vmatprep.subr.bf16.mxu0 0
    %276 = vmatpush1.bf16.msra.mxu0 %v270
    %277 = vmatprep.subr.bf16.mxu0 0
    %278 = vmatpush1.bf16.msra.mxu0 0
    %279 = vmatprep.subr.bf16.mxu0 0
    %280 = vmatpush1.bf16.msra.mxu0 0
    %281 = vmatprep.subr.bf16.mxu0 0
    %282 = vmatpush1.bf16.msra.mxu0 0
    %283 = vmatprep.subr.bf16.mxu0 0
    %284 = vmatpush1.bf16.msra.mxu0 0
    %285 = vmatprep.subr.bf16.mxu0 0
    %286 = vmatpush1.bf16.msra.mxu0 0
    %287 = vmatprep.subr.bf16.mxu0 0
    %288 = vmatpush1.bf16.msra.mxu0 0
    %289 = vmatprep.subr.bf16.mxu0 0
    %290 = vmatpush1.bf16.msra.mxu0 0
    %291 = vmatprep.subr.bf16.mxu0 0
    %292 = vmatpush1.bf16.msra.mxu0 0
    %293 = vmatprep.subr.bf16.mxu0 0
    %294 = vmatpush1.bf16.msra.mxu0 0
    %295 = vmatprep.subr.bf16.mxu0 0
    %296 = vmatpush1.bf16.msra.mxu0 0
    %297 = vmatprep.subr.bf16.mxu0 0
    %298 = vmatpush1.bf16.msra.mxu0 0
    %299 = vmatprep.subr.bf16.mxu0 0
    %300 = vmatpush1.bf16.msra.mxu0 0
    %301 = vmatprep.subr.bf16.mxu0 0
    %302 = vmatpush1.bf16.msra.mxu0 0
    %303 = vmatprep.subr.bf16.mxu0 0
    %304 = vmatpush1.bf16.msra.mxu0 0
    %305 = vmatprep.subr.bf16.mxu0 0
    %306 = vmatpush1.bf16.msra.mxu0 0
    %307 = vmatprep.mubr.bf16.mxu0 0
    %308 = vmatmul.mubr.bf16.gmra.mrb[0].mxu0 %v273
    %v309 = vpop.f32.mrb[0].mxu0
    %v310 = vadd.f32 0.0, %v309
    %v311 = vpop.f32.mrb[0].mxu0
    %v312 = vpop.f32.mrb[0].mxu0
    %v313 = vpop.f32.mrb[0].mxu0
    %314 = vdwg.mxu0
    %v315 = vadd.f32 %v262, %v310
    %vm316 = vcmp.gt.f32.partialorder %v315, 0.0
    %v317 = vmul.f32 %v315, 1.442695
    %v318 = vpow.pop %v317
    %v319 = vsub.f32 %v318, 1.0
    %v320 = vsel %vm316, %v315, %v319
    %v321 = vld [vmem:[%s1] sm:$0xff]
    %v322 = vadd.f32 %v320, %v321
    %vm323 = vcmask 261120
    %v324 = vsel %vm323, %v322, 0.0
    %325 = vadd.xlane.f32.xlu0 %v324
    %v326 = vpop.xlane.xlu0 %325
    %v327 = vrcp.pop 32.0
    %v328 = vmul.f32 %v326, %v327
    %v329 = vsub.f32 %v322, %v328
    %v330 = vmul.f32 %v329, %v329
    %v331 = vsel %vm323, %v330, 0.0
    %332 = vadd.xlane.f32.xlu0 %v331
    %v333 = vpop.xlane.xlu0 %332
    %v334 = vmul.f32 %v333, %v327
    %v335 = vadd.f32 %v334, 1e-06
    %v336 = vrsqrt.pop %v335
    %v337 = vmul.f32 %v329, %v336
    %v338 = vld [vmem:[%s3] sm:$0x1]
    %v340 = vlaneseq
    %v341 = vshrl.u32 %v340, 7
    %v342 = vsub.s32 0, %v341
    %v343 = vrot.slane %v338, %v342
    %v345 = vmul.f32 %v337, %v343
    %v346 = vld [vmem:[%s4] sm:$0x1]
    %v348 = vlaneseq
    %v349 = vshrl.u32 %v348, 7
    %v350 = vsub.s32 0, %v349
    %v351 = vrot.slane %v346, %v350
    %v353 = vadd.f32 %v345, %v351
    %v354 = vld [vmem:[%s5] sm:$0xff]
    %v355 = vld [vmem:[%s5 + $0x8] sm:$0xff]
    %v356 = vld [vmem:[%s5 + $0x10] sm:$0xff]
    %v357 = vld [vmem:[%s5 + $0x18] sm:$0xff]
    %v358 = vld [vmem:[%s6] sm:$0x1]
    %v360 = vlaneseq
    %v361 = vshrl.u32 %v360, 7
    %v362 = vsub.s32 0, %v361
    %v363 = vrot.slane %v358, %v362
    %v366 = vsel %vm323, %v353, 0
    %368 = vmatprep.subr.mxu0 0.0
    %369 = vmatpush1.msra.mxu0 %v354
    %370 = vmatprep.subr.mxu0 0.0
    %371 = vmatpush1.msra.mxu0 %v355
    %372 = vmatprep.subr.mxu0 0.0
    %373 = vmatpush1.msra.mxu0 %v356
    %374 = vmatprep.subr.mxu0 0.0
    %375 = vmatpush1.msra.mxu0 %v357
    %376 = vmatprep.subr.mxu0 0.0
    %377 = vmatpush1.msra.mxu0 0.0
    %378 = vmatprep.subr.mxu0 0.0
    %379 = vmatpush1.msra.mxu0 0.0
    %380 = vmatprep.subr.mxu0 0.0
    %381 = vmatpush1.msra.mxu0 0.0
    %382 = vmatprep.subr.mxu0 0.0
    %383 = vmatpush1.msra.mxu0 0.0
    %384 = vmatprep.subr.mxu0 0.0
    %385 = vmatpush1.msra.mxu0 0.0
    %386 = vmatprep.subr.mxu0 0.0
    %387 = vmatpush1.msra.mxu0 0.0
    %388 = vmatprep.subr.mxu0 0.0
    %389 = vmatpush1.msra.mxu0 0.0
    %390 = vmatprep.subr.mxu0 0.0
    %391 = vmatpush1.msra.mxu0 0.0
    %392 = vmatprep.subr.mxu0 0.0
    %393 = vmatpush1.msra.mxu0 0.0
    %394 = vmatprep.subr.mxu0 0.0
    %395 = vmatpush1.msra.mxu0 0.0
    %396 = vmatprep.subr.mxu0 0.0
    %397 = vmatpush1.msra.mxu0 0.0
    %398 = vmatprep.subr.mxu0 0.0
    %399 = vmatpush1.msra.mxu0 0.0
    %400 = vmatprep.subr.mxu0 0.0
    %401 = vmatpush1.msra.mxu0 0.0
    %402 = vmatprep.subr.mxu0 0.0
    %403 = vmatpush1.msra.mxu0 0.0
    %404 = vmatprep.subr.mxu0 0.0
    %405 = vmatpush1.msra.mxu0 0.0
    %406 = vmatprep.subr.mxu0 0.0
    %407 = vmatpush1.msra.mxu0 0.0
    %408 = vmatprep.subr.mxu0 0.0
    %409 = vmatpush1.msra.mxu0 0.0
    %410 = vmatprep.subr.mxu0 0.0
    %411 = vmatpush1.msra.mxu0 0.0
    %412 = vmatprep.subr.mxu0 0.0
    %413 = vmatpush1.msra.mxu0 0.0
    %414 = vmatprep.subr.mxu0 0.0
    %415 = vmatpush1.msra.mxu0 0.0
    %416 = vmatprep.subr.mxu0 0.0
    %417 = vmatpush1.msra.mxu0 0.0
    %418 = vmatprep.subr.mxu0 0.0
    %419 = vmatpush1.msra.mxu0 0.0
    %420 = vmatprep.subr.mxu0 0.0
    %421 = vmatpush1.msra.mxu0 0.0
    %422 = vmatprep.subr.mxu0 0.0
    %423 = vmatpush1.msra.mxu0 0.0
    %424 = vmatprep.subr.mxu0 0.0
    %425 = vmatpush1.msra.mxu0 0.0
    %426 = vmatprep.subr.mxu0 0.0
    %427 = vmatpush1.msra.mxu0 0.0
    %428 = vmatprep.subr.mxu0 0.0
    %429 = vmatpush1.msra.mxu0 0.0
    %430 = vmatprep.subr.mxu0 0.0
    %431 = vmatpush1.msra.mxu0 0.0
    %432 = vmatprep.mubr.f32.mxu0 0.0
    %433 = vmatmul.mubr.f32.gmra.mrb[0].mxu0 %v366
    %v434 = vpop.f32.mrb[0].mxu0
    %v435 = vadd.f32 %v363, %v434
    %v436 = vpop.f32.mrb[0].mxu0
    %437 = vdwg.mxu0
    %v438 = vmul.f32 %v435, 0.5
    %v439 = vmul.f32 %v435, %v435
    %v440 = vmul.f32 %v435, %v439
    %v441 = vmul.f32 %v440, 0.044715
    %v442 = vadd.f32 %v435, %v441
    %v443 = vmul.f32 %v442, 0.7978846
    %v444 = vtanh.pop %v443
    %v445 = vadd.f32 %v444, 1.0
    %v446 = vmul.f32 %v438, %v445
    %v447 = vld [vmem:[%s7] sm:$0xff]
    %v448 = vld [vmem:[%s7 + $0x8] sm:$0xff]
    %v449 = vld [vmem:[%s7 + $0x10] sm:$0xff]
    %v450 = vld [vmem:[%s7 + $0x18] sm:$0xff]
    %v451 = vld [vmem:[%s7 + $0x20] sm:$0xff]
    %v452 = vld [vmem:[%s7 + $0x28] sm:$0xff]
    %v453 = vld [vmem:[%s7 + $0x30] sm:$0xff]
    %v454 = vld [vmem:[%s7 + $0x38] sm:$0xff]
    %v455 = vld [vmem:[%s8] sm:$0x1]
    %v457 = vlaneseq
    %v458 = vshrl.u32 %v457, 7
    %v459 = vsub.s32 0, %v458
    %v460 = vrot.slane %v455, %v459
    %vm462 = vcmask 523264
    %v464 = vsel %vm462, %v446, 0
    %466 = vmatprep.subr.mxu0 0.0
    %467 = vmatpush1.msra.mxu0 %v447
    %468 = vmatprep.subr.mxu0 0.0
    %469 = vmatpush1.msra.mxu0 %v448
    %470 = vmatprep.subr.mxu0 0.0
    %471 = vmatpush1.msra.mxu0 %v449
    %472 = vmatprep.subr.mxu0 0.0
    %473 = vmatpush1.msra.mxu0 %v450
    %474 = vmatprep.subr.mxu0 0.0
    %475 = vmatpush1.msra.mxu0 %v451
    %476 = vmatprep.subr.mxu0 0.0
    %477 = vmatpush1.msra.mxu0 %v452
    %478 = vmatprep.subr.mxu0 0.0
    %479 = vmatpush1.msra.mxu0 %v453
    %480 = vmatprep.subr.mxu0 0.0
    %481 = vmatpush1.msra.mxu0 %v454
    %482 = vmatprep.subr.mxu0 0.0
    %483 = vmatpush1.msra.mxu0 0.0
    %484 = vmatprep.subr.mxu0 0.0
    %485 = vmatpush1.msra.mxu0 0.0
    %486 = vmatprep.subr.mxu0 0.0
    %487 = vmatpush1.msra.mxu0 0.0
    %488 = vmatprep.subr.mxu0 0.0
    %489 = vmatpush1.msra.mxu0 0.0
    %490 = vmatprep.subr.mxu0 0.0
    %491 = vmatpush1.msra.mxu0 0.0
    %492 = vmatprep.subr.mxu0 0.0
    %493 = vmatpush1.msra.mxu0 0.0
    %494 = vmatprep.subr.mxu0 0.0
    %495 = vmatpush1.msra.mxu0 0.0
    %496 = vmatprep.subr.mxu0 0.0
    %497 = vmatpush1.msra.mxu0 0.0
    %498 = vmatprep.subr.mxu0 0.0
    %499 = vmatpush1.msra.mxu0 0.0
    %500 = vmatprep.subr.mxu0 0.0
    %501 = vmatpush1.msra.mxu0 0.0
    %502 = vmatprep.subr.mxu0 0.0
    %503 = vmatpush1.msra.mxu0 0.0
    %504 = vmatprep.subr.mxu0 0.0
    %505 = vmatpush1.msra.mxu0 0.0
    %506 = vmatprep.subr.mxu0 0.0
    %507 = vmatpush1.msra.mxu0 0.0
    %508 = vmatprep.subr.mxu0 0.0
    %509 = vmatpush1.msra.mxu0 0.0
    %510 = vmatprep.subr.mxu0 0.0
    %511 = vmatpush1.msra.mxu0 0.0
    %512 = vmatprep.subr.mxu0 0.0
    %513 = vmatpush1.msra.mxu0 0.0
    %514 = vmatprep.subr.mxu0 0.0
    %515 = vmatpush1.msra.mxu0 0.0
    %516 = vmatprep.subr.mxu0 0.0
    %517 = vmatpush1.msra.mxu0 0.0
    %518 = vmatprep.subr.mxu0 0.0
    %519 = vmatpush1.msra.mxu0 0.0
    %520 = vmatprep.subr.mxu0 0.0
    %521 = vmatpush1.msra.mxu0 0.0
    %522 = vmatprep.subr.mxu0 0.0
    %523 = vmatpush1.msra.mxu0 0.0
    %524 = vmatprep.subr.mxu0 0.0
    %525 = vmatpush1.msra.mxu0 0.0
    %526 = vmatprep.subr.mxu0 0.0
    %527 = vmatpush1.msra.mxu0 0.0
    %528 = vmatprep.subr.mxu0 0.0
    %529 = vmatpush1.msra.mxu0 0.0
    %530 = vmatprep.mubr.f32.mxu0 0.0
    %531 = vmatmul.mubr.f32.gmra.mrb[0].mxu0 %v464
    %v532 = vpop.f32.mrb[0].mxu0
    %v533 = vadd.f32 %v460, %v532
    %v534 = vpop.f32.mrb[0].mxu0
    %535 = vdwg.mxu0
    %v536 = vadd.f32 %v533, %v322
    %537 = vst.msk [vmem:[#allocation2] sm:$0xff] %vm323, %v536
    // Predicated region
    $region38: #{tpu_custom_call.1} parent=1 // pred_check
      _
    $region39: #{tpu_custom_call.1} parent=1 // pred_check_branch
      %539 = sbr.rel (0) target = $region41
    $region40: #{tpu_custom_call.1} parent=1 // pred_region
      %s541 = ssub.s32 128, 128
      %542 = vsyncadd [#allocation3], %s541
      %s544 = sshll.u32 [#allocation2], 4
      %s545 = int_to_ptr.vmem [resolvable:$true] %s544
      %547 = dma.vmem_to_hbm [thread:$0]  %s545, 128, %s9, [#allocation3]
    $region41: #{tpu_custom_call.1} parent=1 // pred_fallthru
      _
    // Predicated region
    $region42: #{tpu_custom_call.1} parent=1 // pred_check
      _
    $region43: #{tpu_custom_call.1} parent=1 // pred_check_branch
      %549 = sbr.rel (0) target = $region45
    $region44: #{tpu_custom_call.1} parent=1 // pred_region
      %550 = dma.done [#allocation3], 128
    $region45: #{tpu_custom_call.1} parent=1 // pred_fallthru
      _
    %551 = vsyncpa [#allocation3], 1

</llo_original>
